<compile_context>
chip_gen: v7x
topology: tpu7x:2x2x1
jax: 0.10.0
libtpu: 0.0.40
codegen_flags: <defaults>
</compile_context>

<pallas_src>
import jax
import jax.numpy as jnp
from jax.experimental import pallas as pl
from jax.experimental.pallas import tpu as pltpu


# ---------------------------------------------------------------------------
# Kernel
# ---------------------------------------------------------------------------
def rnn_kernel(c_ref, xt_ref, o_ref):
    # c_ref : SMEM f32[6]      = [c0, c1, c2, c3, c4, c5] (folded affine coeffs)
    # xt_ref: VMEM [5, TB]     feature-major tile (batch on the 128-lane axis)
    # o_ref : VMEM f32[1, TB]  lane-dense output tile (unmasked full-vreg stores)
    x = xt_ref[...].astype(jnp.float32)          # upcast (no-op for f32 input)
    # independent FMAs + short tree reduction (no serial recurrence chain)
    t01 = x[0:1, :] * c_ref[1] + x[1:2, :] * c_ref[2]
    t23 = x[2:3, :] * c_ref[3] + x[3:4, :] * c_ref[4]
    t4c = x[4:5, :] * c_ref[5] + c_ref[0]
    o_ref[...] = (t01 + t23) + t4c               # (1, TB)


# ---------------------------------------------------------------------------
# Tiling / launch helpers
# ---------------------------------------------------------------------------
def _cdiv(a, b):
    return -(-a // b)


def _round_up(a, b):
    return _cdiv(a, b) * b


def _choose_tiling(batch, max_lane_tile):
    """Split the (128-padded) batch into equal 128-aligned lane tiles.

    Returns (tile_lanes, padded_batch, num_tiles). Waste is < 128 lanes per
    tile (never up to a full max-tile of dead lanes).
    """
    max_lane_tile = max(128, _round_up(max_lane_tile, 128))
    b128 = _round_up(max(batch, 1), 128)
    if b128 <= max_lane_tile:
        return b128, b128, 1
    nb = _cdiv(b128, max_lane_tile)
    tb = _round_up(_cdiv(b128, nb), 128)
    return tb, nb * tb, nb


def _dimension_semantics(num_tiles):
    """CORE_PARALLEL on multi-TC chips (v7x) so both TensorCores drive DMA;
    plain "parallel" elsewhere (no-op on single-TC v5e/v6e)."""
    if num_tiles >= 2:
        try:
            kind = jax.devices()[0].device_kind.lower().replace(" ", "")
        except Exception:  # pragma: no cover - defensive
            kind = ""
        core_parallel = getattr(pltpu, "CORE_PARALLEL", None)
        if core_parallel is not None and ("v7" in kind or "tpu7" in kind):
            return (core_parallel,)
    return ("parallel",)


# ---------------------------------------------------------------------------
# Forward passes
# ---------------------------------------------------------------------------
def rnn_forward_feature_major(x_fm, coeffs, *, max_lane_tile=128 * 1024):
    """Fast path. x_fm: (5, B) feature-major (f32 or bf16), coeffs: (6,) f32.
    Returns (1, B) f32.  No transpose is materialized."""
    f, batch = x_fm.shape
    assert f == 5, f"expected 5 features, got {f}"
    coeffs = coeffs.astype(jnp.float32)

    tb, b_pad, nb = _choose_tiling(batch, max_lane_tile)
    if b_pad != batch:
        x_fm = jnp.pad(x_fm, ((0, 0), (0, b_pad - batch)))

    # Double-buffered VMEM estimate: in + out blocks, each padded to 8 sublanes
    # (f32 accounting is an upper bound for bf16 too) + headroom for Mosaic
    # internal scratch. Floored at 16 MiB; with the default max tile this is
    # ~25 MiB -> fits v7x's 64 MiB physical VMEM and raises v5e's 16 MiB
    # scoped default enough for large tiles.
    vmem_limit = max(128 * tb + (8 << 20), 16 << 20)

    out_fm = pl.pallas_call(
        rnn_kernel,
        out_shape=jax.ShapeDtypeStruct((1, b_pad), jnp.float32),
        grid_spec=pltpu.PrefetchScalarGridSpec(
            num_scalar_prefetch=1,                       # coeffs -> SMEM
            grid=(nb,),
            in_specs=[pl.BlockSpec((5, tb), lambda i, c: (0, i))],
            out_specs=pl.BlockSpec((1, tb), lambda i, c: (0, i)),
        ),
        compiler_params=pltpu.CompilerParams(
            dimension_semantics=_dimension_semantics(nb),
            vmem_limit_bytes=int(vmem_limit),
        ),
    )(coeffs, x_fm)

    return out_fm[:, :batch]                             # (1, B), padded lanes dropped


def rnn_forward(x, coeffs, *, max_lane_tile=128 * 1024):
    """Convenience wrapper matching the PyTorch interface.
    x: (B, 5) row-major -> (B, 1).

    NOTE: the transpose below materializes a full extra HBM read+write of x;
    for a purely bandwidth-bound op that roughly doubles end-to-end traffic.
    Prefer producing x feature-major upstream and calling
    rnn_forward_feature_major directly.
    """
    out_fm = rnn_forward_feature_major(x.T, coeffs, max_lane_tile=max_lane_tile)
    return out_fm.T                                      # (B, 1)


# ---------------------------------------------------------------------------
# Parameters / reference
# ---------------------------------------------------------------------------
def init_params(key):
    """Deterministic init mimicking torch.nn.Linear's U(-1/sqrt(fan_in), ...)."""
    ks = jax.random.split(key, 10)
    # fc1: Linear(1, 1)
    w1 = jax.random.uniform(ks[0], (1, 1), jnp.float32, -1.0, 1.0)
    b1 = jax.random.uniform(ks[1], (1,), jnp.float32, -1.0, 1.0)
    # fc2..fc5: Linear(2, 1)  (weight[0,0] multiplies prev, weight[0,1] multiplies x_k)
    bound = 1.0 / jnp.sqrt(2.0)
    ws, bs = [], []
    for i in range(4):
        ws.append(jax.random.uniform(ks[2 + 2 * i], (1, 2), jnp.float32, -bound, bound))
        bs.append(jax.random.uniform(ks[3 + 2 * i], (1,), jnp.float32, -bound, bound))
    return w1, b1, ws, bs


def fold_params(w1, b1, ws, bs):
    """Fold the affine chain (the sigmoid result is discarded in the reference
    module, so no nonlinearity applies) into out = c0 + sum_k c_k * x_k.
    Returns f32[6] = [c0, c1..c5]."""
    c_x = [w1[0, 0], 0.0, 0.0, 0.0, 0.0]
    c_0 = b1[0]
    for k in range(4):                       # layers fc2..fc5
        wp, wx, b = ws[k][0, 0], ws[k][0, 1], bs[k][0]
        c_x = [wp * c for c in c_x]
        c_x[k + 1] = wx
        c_0 = wp * c_0 + b
    return jnp.stack([c_0] + c_x).astype(jnp.float32)     # (6,)


def rnn_reference(x, w1, b1, ws, bs):
    """Pure-JAX reference mirroring the PyTorch forward (sigmoid result discarded)."""
    out = x[:, 0:1] @ w1.T + b1
    for k, (w, b) in enumerate(zip(ws, bs), start=1):
        out = jnp.concatenate([out, x[:, k:k + 1]], axis=1) @ w.T + b
    return out


# ---------------------------------------------------------------------------
# Self-test
# ---------------------------------------------------------------------------
if __name__ == "__main__":
    key = jax.random.PRNGKey(0)
    k_p, k_x = jax.random.split(key)

    B = 1000                                  # exercises lane padding (-> 1024)
    x = jax.random.normal(k_x, (B, 5), dtype=jnp.float32)

    w1, b1, ws, bs = init_params(k_p)
    coeffs = fold_params(w1, b1, ws, bs)
    ref = rnn_reference(x, w1, b1, ws, bs)

    # Row-major convenience path (matches the PyTorch interface).
    out = jax.block_until_ready(rnn_forward(x, coeffs))
    assert out.shape == (B, 1)
    assert jnp.allclose(out, ref, atol=1e-5, rtol=1e-5), (out[:4], ref[:4])

    # Feature-major fast path (no transpose on the hot path).
    out_fm = jax.block_until_ready(rnn_forward_feature_major(x.T, coeffs))
    assert out_fm.shape == (1, B)
    assert jnp.allclose(out_fm, ref.T, atol=1e-5, rtol=1e-5)

    # Also exercise a multi-tile grid (small max_lane_tile forces nb > 1).
    out_mt = jax.block_until_ready(rnn_forward(x, coeffs, max_lane_tile=256))
    assert jnp.allclose(out_mt, ref, atol=1e-5, rtol=1e-5)

    print("KERNEL_OK")
</pallas_src>

<mosaic_0001>
module attributes {stable_mosaic.version = 11 : i64} {
  func.func @rnn_kernel(%arg0: i32, %arg1: memref<6xf32, #tpu.memory_space<smem>>, %arg2: memref<5x1024xf32, #tpu.memory_space<vmem>>, %arg3: memref<1x1024xf32, #tpu.memory_space<vmem>>) attributes {dimension_semantics = [#tpu.dimension_semantics<parallel>], iteration_bounds = array<i64: 1>, scalar_prefetch = 1 : i64, scratch_operands = 0 : i64, tpu.core_type = #tpu.core_type<tc>, window_params = [{transform_indices = @transform_0, window_bounds = array<i64: 5, 1024>}, {transform_indices = @transform_1, window_bounds = array<i64: 1, 1024>}]} {
    %c0 = arith.constant 0 : index
    %c0_0 = arith.constant 0 : index
    %0 = vector.load %arg2[%c0, %c0_0] : memref<5x1024xf32, #tpu.memory_space<vmem>>, vector<5x1024xf32>
    %1 = vector.extract_strided_slice %0 {offsets = [0, 0], sizes = [1, 1024], strides = [1, 1]} : vector<5x1024xf32> to vector<1x1024xf32>
    %c1 = arith.constant 1 : index
    %2 = memref.load %arg1[%c1] : memref<6xf32, #tpu.memory_space<smem>>
    %3 = vector.broadcast %2 : f32 to vector<1x1024xf32>
    %4 = arith.mulf %1, %3 : vector<1x1024xf32>
    %5 = vector.extract_strided_slice %0 {offsets = [1, 0], sizes = [1, 1024], strides = [1, 1]} : vector<5x1024xf32> to vector<1x1024xf32>
    %c2 = arith.constant 2 : index
    %6 = memref.load %arg1[%c2] : memref<6xf32, #tpu.memory_space<smem>>
    %7 = vector.broadcast %6 : f32 to vector<1x1024xf32>
    %8 = arith.mulf %5, %7 : vector<1x1024xf32>
    %9 = arith.addf %4, %8 : vector<1x1024xf32>
    %10 = vector.extract_strided_slice %0 {offsets = [2, 0], sizes = [1, 1024], strides = [1, 1]} : vector<5x1024xf32> to vector<1x1024xf32>
    %c3 = arith.constant 3 : index
    %11 = memref.load %arg1[%c3] : memref<6xf32, #tpu.memory_space<smem>>
    %12 = vector.broadcast %11 : f32 to vector<1x1024xf32>
    %13 = arith.mulf %10, %12 : vector<1x1024xf32>
    %14 = vector.extract_strided_slice %0 {offsets = [3, 0], sizes = [1, 1024], strides = [1, 1]} : vector<5x1024xf32> to vector<1x1024xf32>
    %c4 = arith.constant 4 : index
    %15 = memref.load %arg1[%c4] : memref<6xf32, #tpu.memory_space<smem>>
    %16 = vector.broadcast %15 : f32 to vector<1x1024xf32>
    %17 = arith.mulf %14, %16 : vector<1x1024xf32>
    %18 = arith.addf %13, %17 : vector<1x1024xf32>
    %19 = vector.extract_strided_slice %0 {offsets = [4, 0], sizes = [1, 1024], strides = [1, 1]} : vector<5x1024xf32> to vector<1x1024xf32>
    %c5 = arith.constant 5 : index
    %20 = memref.load %arg1[%c5] : memref<6xf32, #tpu.memory_space<smem>>
    %21 = vector.broadcast %20 : f32 to vector<1x1024xf32>
    %22 = arith.mulf %19, %21 : vector<1x1024xf32>
    %c0_1 = arith.constant 0 : index
    %23 = memref.load %arg1[%c0_1] : memref<6xf32, #tpu.memory_space<smem>>
    %24 = vector.broadcast %23 : f32 to vector<1x1024xf32>
    %25 = arith.addf %22, %24 : vector<1x1024xf32>
    %26 = arith.addf %9, %18 : vector<1x1024xf32>
    %27 = arith.addf %26, %25 : vector<1x1024xf32>
    %c0_2 = arith.constant 0 : index
    %c0_3 = arith.constant 0 : index
    %28 = vector.load %arg3[%c0_2, %c0_3] : memref<1x1024xf32, #tpu.memory_space<vmem>>, vector<1x1024xf32>
    tpu.vector_store %arg3[%c0_2, %c0_3], %27 {strides = array<i32>} : memref<1x1024xf32, #tpu.memory_space<vmem>>, vector<1x1024xf32>,
    return
  }
  func.func @transform_0(%arg0: i32, %arg1: memref<6xf32, #tpu.memory_space<smem>>) -> (i32, i32) {
    %c0_i32 = arith.constant 0 : i32
    %c0_i32_0 = arith.constant 0 : i32
    return %c0_i32, %arg0 : i32, i32
  }
  func.func @transform_1(%arg0: i32, %arg1: memref<6xf32, #tpu.memory_space<smem>>) -> (i32, i32) {
    %c0_i32 = arith.constant 0 : i32
    %c0_i32_0 = arith.constant 0 : i32
    return %c0_i32, %arg0 : i32, i32
  }
}

</mosaic_0001>

<llo_original>
// kernel: tpu_custom_call.1
$region0: #{tpu_custom_call.1}
  #allocation0 [shape = 'u32[]', space=smem, size = 0x4, offset = 0x4, fixed_abs, tag = 'smem constant byte address 0x4 - core index']
  #allocation1 [shape = 'u32[144,128]{1,0:T(1,128)}', space=vmem, size = 0x12000, scoped, tag = 'internal scratch']
  #allocation2 [shape = 's32[1]{0}', space=sflag, size = 0x4, scoped, tag = 'scoped memory for tpu_custom_call.1']
  #allocation3 [shape = 'u8[512]{0}', space=smem, size = 0x200, scoped, tag = 'prefetched SMEM operand 0']
  %s0 = inlined_call_operand.hbm [shape: f32[6], index: 0, kind: input, shape index: {}]
  %s1 = inlined_call_operand.hbm [shape: f32[5,1024], index: 1, kind: input, shape index: {}]
  %s2 = inlined_call_operand.hbm [shape: f32[1,1024], index: 2, kind: output, shape index: {}]
  %s3 = sld [smem:[#allocation0]]
  $region18: #{tpu_custom_call.1} parent=0
    _
  %s5 = ssub.s32 1, %s3
  %s6 = scalar_select 0, %s5, %s3
  %8 = dma.hbm_to_smem %s0, 16, [#allocation3], [#allocation2]
  %9 = dma.done [#allocation2], 16
  %10 = sfence
  $region1: #{tpu_custom_call.1} parent=0
    #allocation4 [shape = 'u8[32768]{0}', space=vmem, size = 0x8000, scoped, tag = 'input window, operand 1, single buffered']
    #allocation5 [shape = 's32[1]{0}', space=sflag, size = 0x4, scoped, tag = 'scoped memory for tpu_custom_call.1']
    #allocation6 [shape = 's32[1]{0}', space=sflag, size = 0x4, scoped, tag = 'scoped memory for tpu_custom_call.1']
    #allocation7 [shape = 'u8[4096]{0}', space=vmem, size = 0x1000, scoped, tag = 'output window, operand 0, single buffered']
    %11 = vsyncpa [#allocation5], 0
    %12 = vsyncpa [#allocation6], 0
    // Predicated region
    $region2: #{tpu_custom_call.1} parent=1 // pred_check
      _
    $region3: #{tpu_custom_call.1} parent=1 // pred_check_branch
      %14 = sbr.rel (0) target = $region5
    $region4: #{tpu_custom_call.1} parent=1 // pred_region
      %s16 = ssub.s32 1024, 1024
      %17 = vsyncadd [#allocation5], %s16
      %s19 = sshll.u32 [#allocation4], 4
      %s20 = int_to_ptr.vmem [resolvable:$true] %s19
      %22 = dma.hbm_to_vmem [thread:$0]  %s1, 1024, %s20, [#allocation5]
    $region5: #{tpu_custom_call.1} parent=1 // pred_fallthru
      _
    // Predicated region
    $region6: #{tpu_custom_call.1} parent=1 // pred_check
      _
    $region7: #{tpu_custom_call.1} parent=1 // pred_check_branch
      %24 = sbr.rel (0) target = $region9
    $region8: #{tpu_custom_call.1} parent=1 // pred_region
      %25 = dma.done [#allocation5], 1024
    $region9: #{tpu_custom_call.1} parent=1 // pred_fallthru
      _
    %v26 = vld [vmem:[#allocation4] sm:$0x1f]
    %v27 = vld [vmem:[#allocation4 + $0x8] sm:$0x1f]
    %v28 = vld [vmem:[#allocation4 + $0x10] sm:$0x1f]
    %v29 = vld [vmem:[#allocation4 + $0x18] sm:$0x1f]
    %v30 = vld [vmem:[#allocation4 + $0x20] sm:$0x1f]
    %v31 = vld [vmem:[#allocation4 + $0x28] sm:$0x1f]
    %v32 = vld [vmem:[#allocation4 + $0x30] sm:$0x1f]
    %v33 = vld [vmem:[#allocation4 + $0x38] sm:$0x1f]
    %s34 = sld [smem:[#allocation3 + $0x1]]
    %v35 = vstv %s34
    %v36 = vmul.f32 %v26, %v35
    %v37 = vmul.f32 %v27, %v35
    %v38 = vmul.f32 %v28, %v35
    %v39 = vmul.f32 %v29, %v35
    %v40 = vmul.f32 %v30, %v35
    %v41 = vmul.f32 %v31, %v35
    %v42 = vmul.f32 %v32, %v35
    %v43 = vmul.f32 %v33, %v35
    %s44 = sld [smem:[#allocation3 + $0x2]]
    %v45 = vstv %s44
    %v46 = vmul.f32 %v26, %v45
    %v47 = vmul.f32 %v27, %v45
    %v48 = vmul.f32 %v28, %v45
    %v49 = vmul.f32 %v29, %v45
    %v50 = vmul.f32 %v30, %v45
    %v51 = vmul.f32 %v31, %v45
    %v52 = vmul.f32 %v32, %v45
    %v53 = vmul.f32 %v33, %v45
    %v62 = vrot.slane %v46, 1
    %v63 = vrot.slane %v47, 1
    %v64 = vrot.slane %v48, 1
    %v65 = vrot.slane %v49, 1
    %v66 = vrot.slane %v50, 1
    %v67 = vrot.slane %v51, 1
    %v68 = vrot.slane %v52, 1
    %v69 = vrot.slane %v53, 1
    %v78 = vadd.f32 %v36, %v62
    %v79 = vadd.f32 %v37, %v63
    %v80 = vadd.f32 %v38, %v64
    %v81 = vadd.f32 %v39, %v65
    %v82 = vadd.f32 %v40, %v66
    %v83 = vadd.f32 %v41, %v67
    %v84 = vadd.f32 %v42, %v68
    %v85 = vadd.f32 %v43, %v69
    %s86 = sld [smem:[#allocation3 + $0x3]]
    %v87 = vstv %s86
    %v88 = vmul.f32 %v26, %v87
    %v89 = vmul.f32 %v27, %v87
    %v90 = vmul.f32 %v28, %v87
    %v91 = vmul.f32 %v29, %v87
    %v92 = vmul.f32 %v30, %v87
    %v93 = vmul.f32 %v31, %v87
    %v94 = vmul.f32 %v32, %v87
    %v95 = vmul.f32 %v33, %v87
    %s96 = sld [smem:[#allocation3 + $0x4]]
    %v97 = vstv %s96
    %v98 = vmul.f32 %v26, %v97
    %v99 = vmul.f32 %v27, %v97
    %v100 = vmul.f32 %v28, %v97
    %v101 = vmul.f32 %v29, %v97
    %v102 = vmul.f32 %v30, %v97
    %v103 = vmul.f32 %v31, %v97
    %v104 = vmul.f32 %v32, %v97
    %v105 = vmul.f32 %v33, %v97
    %v114 = vrot.slane %v98, 1
    %v115 = vrot.slane %v99, 1
    %v116 = vrot.slane %v100, 1
    %v117 = vrot.slane %v101, 1
    %v118 = vrot.slane %v102, 1
    %v119 = vrot.slane %v103, 1
    %v120 = vrot.slane %v104, 1
    %v121 = vrot.slane %v105, 1
    %v130 = vadd.f32 %v88, %v114
    %v131 = vadd.f32 %v89, %v115
    %v132 = vadd.f32 %v90, %v116
    %v133 = vadd.f32 %v91, %v117
    %v134 = vadd.f32 %v92, %v118
    %v135 = vadd.f32 %v93, %v119
    %v136 = vadd.f32 %v94, %v120
    %v137 = vadd.f32 %v95, %v121
    %s138 = sld [smem:[#allocation3 + $0x5]]
    %v139 = vstv %s138
    %v140 = vmul.f32 %v26, %v139
    %v141 = vmul.f32 %v27, %v139
    %v142 = vmul.f32 %v28, %v139
    %v143 = vmul.f32 %v29, %v139
    %v144 = vmul.f32 %v30, %v139
    %v145 = vmul.f32 %v31, %v139
    %v146 = vmul.f32 %v32, %v139
    %v147 = vmul.f32 %v33, %v139
    %s148 = sld [smem:[#allocation3]]
    %v149 = vstv %s148
    %v150 = vadd.f32 %v140, %v149
    %v151 = vadd.f32 %v141, %v149
    %v152 = vadd.f32 %v142, %v149
    %v153 = vadd.f32 %v143, %v149
    %v154 = vadd.f32 %v144, %v149
    %v155 = vadd.f32 %v145, %v149
    %v156 = vadd.f32 %v146, %v149
    %v157 = vadd.f32 %v147, %v149
    %v166 = vrot.slane %v130, 2
    %v167 = vrot.slane %v131, 2
    %v168 = vrot.slane %v132, 2
    %v169 = vrot.slane %v133, 2
    %v170 = vrot.slane %v134, 2
    %v171 = vrot.slane %v135, 2
    %v172 = vrot.slane %v136, 2
    %v173 = vrot.slane %v137, 2
    %v182 = vadd.f32 %v78, %v166
    %v183 = vadd.f32 %v79, %v167
    %v184 = vadd.f32 %v80, %v168
    %v185 = vadd.f32 %v81, %v169
    %v186 = vadd.f32 %v82, %v170
    %v187 = vadd.f32 %v83, %v171
    %v188 = vadd.f32 %v84, %v172
    %v189 = vadd.f32 %v85, %v173
    %v198 = vrot.slane %v150, 4
    %v199 = vrot.slane %v151, 4
    %v200 = vrot.slane %v152, 4
    %v201 = vrot.slane %v153, 4
    %v202 = vrot.slane %v154, 4
    %v203 = vrot.slane %v155, 4
    %v204 = vrot.slane %v156, 4
    %v205 = vrot.slane %v157, 4
    %v214 = vadd.f32 %v182, %v198
    %v215 = vadd.f32 %v183, %v199
    %v216 = vadd.f32 %v184, %v200
    %v217 = vadd.f32 %v185, %v201
    %v218 = vadd.f32 %v186, %v202
    %v219 = vadd.f32 %v187, %v203
    %v220 = vadd.f32 %v188, %v204
    %v221 = vadd.f32 %v189, %v205
    %v230 = vcombine.low %v214, %v215
    %v231 = vcombine.low %v216, %v217
    %v232 = vcombine.low %v218, %v219
    %v233 = vcombine.low %v220, %v221
    %v235 = vunpack.c.l.s4 1966171168
    %v236 = vunpack.c.0.s8 %v235
    %v237 = vlaneseq
    %v238 = vshrl.u32 %v237, 7
    %v239 = vsub.s32 %v236, %v238
    %v240 = vrot.slane %v230, %v239
    %v242 = vunpack.c.l.s4 1966171168
    %v243 = vunpack.c.0.s8 %v242
    %v244 = vlaneseq
    %v245 = vshrl.u32 %v244, 7
    %v246 = vsub.s32 %v243, %v245
    %v247 = vrot.slane %v231, %v246
    %v249 = vunpack.c.l.s4 1966171168
    %v250 = vunpack.c.0.s8 %v249
    %v251 = vlaneseq
    %v252 = vshrl.u32 %v251, 7
    %v253 = vsub.s32 %v250, %v252
    %v254 = vrot.slane %v232, %v253
    %v256 = vunpack.c.l.s4 1966171168
    %v257 = vunpack.c.0.s8 %v256
    %v258 = vlaneseq
    %v259 = vshrl.u32 %v258, 7
    %v260 = vsub.s32 %v257, %v259
    %v261 = vrot.slane %v233, %v260
    %v262 = vcombine.low %v240, %v247
    %v263 = vcombine.low %v254, %v261
    %v265 = vunpack.c.l.s4 1966171168
    %v266 = vunpack.c.0.s8 %v265
    %v267 = vlaneseq
    %v268 = vshrl.u32 %v267, 7
    %v269 = vsub.s32 %v266, %v268
    %v270 = vrot.slane %v262, %v269
    %v272 = vunpack.c.l.s4 1966171168
    %v273 = vunpack.c.0.s8 %v272
    %v274 = vlaneseq
    %v275 = vshrl.u32 %v274, 7
    %v276 = vsub.s32 %v273, %v275
    %v277 = vrot.slane %v263, %v276
    %v278 = vcombine.low %v270, %v277
    %280 = vst [vmem:[#allocation7] sm:$0xff] %v278
    // Predicated region
    $region10: #{tpu_custom_call.1} parent=1 // pred_check
      _
    $region11: #{tpu_custom_call.1} parent=1 // pred_check_branch
      %282 = sbr.rel (0) target = $region13
    $region12: #{tpu_custom_call.1} parent=1 // pred_region
      %s284 = ssub.s32 128, 128
      %285 = vsyncadd [#allocation6], %s284
      %s287 = sshll.u32 [#allocation7], 4
      %s288 = int_to_ptr.vmem [resolvable:$true] %s287
      %290 = dma.vmem_to_hbm [thread:$0]  %s288, 128, %s2, [#allocation6]
    $region13: #{tpu_custom_call.1} parent=1 // pred_fallthru
      _
    // Predicated region
    $region14: #{tpu_custom_call.1} parent=1 // pred_check
      _
    $region15: #{tpu_custom_call.1} parent=1 // pred_check_branch
      %292 = sbr.rel (0) target = $region17
    $region16: #{tpu_custom_call.1} parent=1 // pred_region
      %293 = dma.done [#allocation6], 128
    $region17: #{tpu_custom_call.1} parent=1 // pred_fallthru
      _
    %294 = vsyncpa [#allocation5], 1
    %295 = vsyncpa [#allocation6], 1

</llo_original>
